<compile_context>
chip_gen: v7x
topology: tpu7x:2x2x1
jax: 0.10.0
libtpu: 0.0.40
codegen_flags: <defaults>
</compile_context>

<pallas_src>
import jax
import jax.numpy as jnp
from jax.experimental import pallas as pl
from jax.experimental.pallas import tpu as pltpu


def _round_up(n, m):
    return ((n + m - 1) // m) * m


# ----------------------------- Pallas kernel --------------------------------
def _style_vectorizer_kernel(x_ref, w_ref, b_ref, o_ref, h_ref):
    # x_ref : [tb, E]      input batch tile (consumed at layer 0 only)
    # w_ref : [1, E, E]    this layer's pre-scaled, transposed weight (in -> out)
    # b_ref : [1, 1, E]    this layer's pre-scaled bias
    # o_ref : [tb, E]      final activations (written at the last layer)
    # h_ref : [tb, E] f32  running activation, resident in VMEM across layers
    layer = pl.program_id(1)

    @pl.when(layer == 0)
    def _init():
        x = x_ref[...].astype(jnp.float32)
        # F.normalize(x, dim=1):  x / max(||x||_2, 1e-12)
        sq = jnp.sum(x * x, axis=-1, keepdims=True)
        h_ref[...] = x * jax.lax.rsqrt(jnp.maximum(sq, 1e-24))

    # EqualLinear + LeakyReLU(0.2): one dense 2D matmul on the MXU, f32 acc.
    y = jnp.dot(h_ref[...], w_ref[0], preferred_element_type=jnp.float32)
    y = y + b_ref[0]
    y = jnp.where(y > 0, y, 0.2 * y)
    h_ref[...] = y

    @pl.when(layer == pl.num_programs(1) - 1)
    def _finalize():
        o_ref[...] = y.astype(o_ref.dtype)


# ------------------------------ JAX glue -------------------------------------
def style_vectorizer_forward(params, x, lr_mul=0.1, batch_tile=128):
    """StyleVectorizer.forward: normalize + depth x (EqualLinear -> LeakyReLU)."""
    w = params["w"].astype(jnp.float32)   # [depth, emb, emb]  (out, in), PyTorch layout
    b = params["b"].astype(jnp.float32)   # [depth, emb]
    depth, emb, _ = w.shape
    B = x.shape[0]

    # Fold lr_mul in and transpose to (in, out) so the kernel computes x @ w.
    w_eff = jnp.transpose(w, (0, 2, 1)) * lr_mul           # [depth, emb, emb]
    b_eff = (b * lr_mul)[:, None, :]                       # [depth, 1, emb]

    # Pad to (8, 128)-dense tiles. Zero padding is inert: padded feature
    # columns/rows of W and b are zero, padded batch rows are sliced off.
    E = _round_up(emb, 128)
    tb = min(_round_up(B, 8), batch_tile)
    Bp = _round_up(B, tb)

    xp = jnp.zeros((Bp, E), jnp.float32).at[:B, :emb].set(x.astype(jnp.float32))
    wp = jnp.zeros((depth, E, E), jnp.float32).at[:, :emb, :emb].set(w_eff)
    bp = jnp.zeros((depth, 1, E), jnp.float32).at[:, :, :emb].set(b_eff)

    grid = (Bp // tb, depth)

    out = pl.pallas_call(
        _style_vectorizer_kernel,
        out_shape=jax.ShapeDtypeStruct((Bp, E), jnp.float32),
        grid_spec=pltpu.PrefetchScalarGridSpec(
            num_scalar_prefetch=0,
            grid=grid,
            in_specs=[
                pl.BlockSpec((tb, E), lambda i, l: (i, 0)),      # x tile (per batch tile)
                pl.BlockSpec((1, E, E), lambda i, l: (l, 0, 0)),  # layer weight
                pl.BlockSpec((1, 1, E), lambda i, l: (l, 0, 0)),  # layer bias
            ],
            out_specs=pl.BlockSpec((tb, E), lambda i, l: (i, 0)),
            scratch_shapes=[pltpu.VMEM((tb, E), jnp.float32)],
        ),
        compiler_params=pltpu.CompilerParams(
            dimension_semantics=("parallel", "arbitrary"),
            vmem_limit_bytes=64 * 1024 * 1024,
        ),
    )(xp, wp, bp)

    return out[:B, :emb].astype(x.dtype)


# ------------------------------ reference ------------------------------------
def _reference_forward(params, x, lr_mul=0.1):
    x = x.astype(jnp.float32)
    norm = jnp.sqrt(jnp.sum(x * x, axis=1, keepdims=True))
    h = x / jnp.maximum(norm, 1e-12)
    for w, b in zip(params["w"], params["b"]):
        h = jnp.dot(h, (w * lr_mul).T,
                    precision=jax.lax.Precision.HIGHEST) + b * lr_mul
        h = jnp.where(h > 0, h, 0.2 * h)
    return h


if __name__ == "__main__":
    key = jax.random.PRNGKey(0)
    k_x, k_w, k_b = jax.random.split(key, 3)

    # Small, lane/sublane-dense shapes: batch=8, emb=128, depth=4, lr_mul=0.1.
    B, emb, depth, lr_mul = 8, 128, 4, 0.1
    x = jax.random.normal(k_x, (B, emb), jnp.float32)
    # EqualLinear: weight ~ N(0,1); the module inits bias to zeros — use a small
    # nonzero bias here so the bias path in the kernel is actually exercised.
    w = jax.random.normal(k_w, (depth, emb, emb), jnp.float32)
    b = 0.01 * jax.random.normal(k_b, (depth, emb), jnp.float32)
    params = dict(w=w, b=b)

    out = style_vectorizer_forward(params, x, lr_mul=lr_mul)
    out = jax.block_until_ready(out)

    ref = _reference_forward(params, x, lr_mul=lr_mul)
    assert out.shape == (B, emb), out.shape
    # Loose-ish tolerance to cover MXU matmul pass-count differences vs XLA.
    assert jnp.allclose(out, ref, rtol=2e-2, atol=2e-2), (
        float(jnp.max(jnp.abs(out - ref))))

    print("KERNEL_OK")
</pallas_src>

<mosaic_0001>
module attributes {stable_mosaic.version = 11 : i64} {
  func.func @_style_vectorizer_kernel(%arg0: i32, %arg1: i32, %arg2: memref<8x128xf32, #tpu.memory_space<vmem>>, %arg3: memref<1x128x128xf32, #tpu.memory_space<vmem>>, %arg4: memref<1x1x128xf32, #tpu.memory_space<vmem>>, %arg5: memref<8x128xf32, #tpu.memory_space<vmem>>, %arg6: memref<8x128xf32, #tpu.memory_space<vmem>>) attributes {dimension_semantics = [#tpu.dimension_semantics<parallel>, #tpu.dimension_semantics<arbitrary>], iteration_bounds = array<i64: 1, 4>, scalar_prefetch = 0 : i64, scratch_operands = 1 : i64, tpu.core_type = #tpu.core_type<tc>, window_params = [{transform_indices = @transform_0, window_bounds = array<i64: 8, 128>}, {transform_indices = @transform_1, window_bounds = array<i64: 1, 128, 128>}, {transform_indices = @transform_2, window_bounds = array<i64: 1, 1, 128>}, {transform_indices = @transform_3, window_bounds = array<i64: 8, 128>}]} {
    %c0_i32 = arith.constant 0 : i32
    %0 = arith.cmpi eq, %arg1, %c0_i32 : i32
    %1 = arith.extui %0 : i1 to i32
    %c0_i32_0 = arith.constant 0 : i32
    %2 = arith.cmpi ne, %1, %c0_i32_0 : i32
    scf.if %2 {
      %c0_13 = arith.constant 0 : index
      %c0_14 = arith.constant 0 : index
      %20 = vector.load %arg2[%c0_13, %c0_14] : memref<8x128xf32, #tpu.memory_space<vmem>>, vector<8x128xf32>
      %21 = arith.mulf %20, %20 : vector<8x128xf32>
      %cst_15 = arith.constant dense<0.000000e+00> : vector<8xf32>
      %22 = vector.multi_reduction <add>, %21, %cst_15 [1] : vector<8x128xf32> to vector<8xf32>
      %23 = vector.shape_cast %22 : vector<8xf32> to vector<8x1xf32>
      %cst_16 = arith.constant 1.000000e-24 : f32
      %24 = vector.broadcast %cst_16 : f32 to vector<8x1xf32>
      %25 = arith.maximumf %23, %24 : vector<8x1xf32>
      %26 = math.rsqrt %25 : vector<8x1xf32>
      %27 = vector.broadcast %26 : vector<8x1xf32> to vector<8x128xf32>
      %28 = arith.mulf %20, %27 : vector<8x128xf32>
      %c0_17 = arith.constant 0 : index
      %c0_18 = arith.constant 0 : index
      %29 = vector.load %arg6[%c0_17, %c0_18] : memref<8x128xf32, #tpu.memory_space<vmem>>, vector<8x128xf32>
      tpu.vector_store %arg6[%c0_17, %c0_18], %28 {strides = array<i32>} : memref<8x128xf32, #tpu.memory_space<vmem>>, vector<8x128xf32>,
    } else {
    }
    %c0 = arith.constant 0 : index
    %c0_1 = arith.constant 0 : index
    %3 = vector.load %arg6[%c0, %c0_1] : memref<8x128xf32, #tpu.memory_space<vmem>>, vector<8x128xf32>
    %c0_2 = arith.constant 0 : index
    %c0_3 = arith.constant 0 : index
    %c0_4 = arith.constant 0 : index
    %4 = vector.load %arg3[%c0_2, %c0_3, %c0_4] : memref<1x128x128xf32, #tpu.memory_space<vmem>>, vector<1x128x128xf32>
    %5 = vector.shape_cast %4 : vector<1x128x128xf32> to vector<128x128xf32>
    %cst = arith.constant dense<0.000000e+00> : vector<8x128xf32>
    %6 = tpu.matmul %3, %5, %cst {dimension_numbers = #tpu.dot_dimension_numbers<[1], [0], [0], [1], [0, 0, 1, 1], [], []>} : vector<8x128xf32>, vector<128x128xf32>, vector<8x128xf32> -> vector<8x128xf32>
    %c0_5 = arith.constant 0 : index
    %c0_6 = arith.constant 0 : index
    %c0_7 = arith.constant 0 : index
    %7 = vector.load %arg4[%c0_5, %c0_6, %c0_7] : memref<1x1x128xf32, #tpu.memory_space<vmem>>, vector<1x1x128xf32>
    %8 = vector.shape_cast %7 : vector<1x1x128xf32> to vector<1x128xf32>
    %9 = vector.broadcast %8 : vector<1x128xf32> to vector<8x128xf32>
    %10 = arith.addf %6, %9 : vector<8x128xf32>
    %cst_8 = arith.constant 0.000000e+00 : f32
    %11 = vector.broadcast %cst_8 : f32 to vector<8x128xf32>
    %12 = arith.cmpf ogt, %10, %11 : vector<8x128xf32>
    %cst_9 = arith.constant 2.000000e-01 : f32
    %13 = vector.broadcast %cst_9 : f32 to vector<8x128xf32>
    %14 = arith.mulf %13, %10 : vector<8x128xf32>
    %15 = arith.select %12, %10, %14 : vector<8x128xi1>, vector<8x128xf32>
    %c0_10 = arith.constant 0 : index
    %c0_11 = arith.constant 0 : index
    %16 = vector.load %arg6[%c0_10, %c0_11] : memref<8x128xf32, #tpu.memory_space<vmem>>, vector<8x128xf32>
    tpu.vector_store %arg6[%c0_10, %c0_11], %15 {strides = array<i32>} : memref<8x128xf32, #tpu.memory_space<vmem>>, vector<8x128xf32>,
    %c3_i32 = arith.constant 3 : i32
    %17 = arith.cmpi eq, %arg1, %c3_i32 : i32
    %18 = arith.extui %17 : i1 to i32
    %c0_i32_12 = arith.constant 0 : i32
    %19 = arith.cmpi ne, %18, %c0_i32_12 : i32
    scf.if %19 {
      %c0_13 = arith.constant 0 : index
      %c0_14 = arith.constant 0 : index
      %20 = vector.load %arg5[%c0_13, %c0_14] : memref<8x128xf32, #tpu.memory_space<vmem>>, vector<8x128xf32>
      tpu.vector_store %arg5[%c0_13, %c0_14], %15 {strides = array<i32>} : memref<8x128xf32, #tpu.memory_space<vmem>>, vector<8x128xf32>,
    } else {
    }
    return
  }
  func.func @transform_0(%arg0: i32, %arg1: i32) -> (i32, i32) {
    %c0_i32 = arith.constant 0 : i32
    %c0_i32_0 = arith.constant 0 : i32
    return %arg0, %c0_i32 : i32, i32
  }
  func.func @transform_1(%arg0: i32, %arg1: i32) -> (i32, i32, i32) {
    %c0_i32 = arith.constant 0 : i32
    %c0_i32_0 = arith.constant 0 : i32
    %c0_i32_1 = arith.constant 0 : i32
    return %arg1, %c0_i32, %c0_i32_0 : i32, i32, i32
  }
  func.func @transform_2(%arg0: i32, %arg1: i32) -> (i32, i32, i32) {
    %c0_i32 = arith.constant 0 : i32
    %c0_i32_0 = arith.constant 0 : i32
    %c0_i32_1 = arith.constant 0 : i32
    return %arg1, %c0_i32, %c0_i32_0 : i32, i32, i32
  }
  func.func @transform_3(%arg0: i32, %arg1: i32) -> (i32, i32) {
    %c0_i32 = arith.constant 0 : i32
    %c0_i32_0 = arith.constant 0 : i32
    return %arg0, %c0_i32 : i32, i32
  }
}

</mosaic_0001>

<llo_original>
// kernel: tpu_custom_call.1
$region0: #{tpu_custom_call.1}
  #allocation0 [shape = 'u32[]', space=smem, size = 0x4, offset = 0x4, fixed_abs, tag = 'smem constant byte address 0x4 - core index']
  #allocation1 [shape = 'u32[144,128]{1,0:T(1,128)}', space=vmem, size = 0x12000, scoped, tag = 'internal scratch']
  #allocation2 [shape = 'f32[8,128]{1,0:T(8,128)}', space=vmem, size = 0x1000, scoped, tag = 'scratch operand']
  %s0 = inlined_call_operand.hbm [shape: f32[8,128], index: 0, kind: input, shape index: {}]
  %s1 = inlined_call_operand.hbm [shape: f32[4,128,128], index: 1, kind: input, shape index: {}]
  %s2 = inlined_call_operand.hbm [shape: f32[4,1,128], index: 2, kind: input, shape index: {}]
  %s3 = inlined_call_operand.hbm [shape: f32[8,128], index: 3, kind: output, shape index: {}]
  %s4 = sld [smem:[#allocation0]]
  $region65: #{tpu_custom_call.1} parent=0
    _
  %s6 = ssub.s32 1, %s4
  %s7 = scalar_select 0, %s6, %s4
  $region1: #{tpu_custom_call.1} parent=0
    #allocation3 [shape = 'u8[4096]{0}', space=vmem, size = 0x1000, scoped, tag = 'input window, operand 0, single buffered']
    #allocation4 [shape = 's32[2]{0}', space=sflag, size = 0x8, scoped, tag = 'scoped memory for tpu_custom_call.1']
    #allocation5 [shape = 's32[2]{0}', space=sflag, size = 0x8, scoped, tag = 'scoped memory for tpu_custom_call.1']
    #allocation6 [shape = 'u8[131072]{0}', space=vmem, size = 0x20000, scoped, tag = 'input window, operand 1']
    #allocation7 [shape = 's32[2]{0}', space=sflag, size = 0x8, scoped, tag = 'scoped memory for tpu_custom_call.1']
    #allocation8 [shape = 'u8[1024]{0}', space=vmem, size = 0x400, scoped, tag = 'input window, operand 2']
    #allocation9 [shape = 'u8[4096]{0}', space=vmem, size = 0x1000, scoped, tag = 'output window, operand 0, single buffered']
    %8 = vsyncpa [#allocation4], 0
    %9 = vsyncpa [#allocation7], 0
    %s10 = scalar_lea.sflag [#allocation7], 1
    %11 = vsyncpa %s10, 0
    %12 = vsyncpa [#allocation5], 0
    loop: start=0, step=1, limit=6
    $region2: #{tpu_custom_call.1} parent=1 // loop_pre_header
      _
    $region3: #{tpu_custom_call.1} parent=1 // loop_header
      %s14 = sphi 0, %s18
      %p15 = scmp.ge.s32.totalorder %s14, 6
      %s21 = sphi 0, %s33
      %s22 = sphi 0, %s29
      %s23 = sphi 0, %s21
      %s24 = sphi 0, %s22
      %s25 = sphi 0, %s23
      %s26 = sphi 0, %s24
      %s36 = sphi 0, %s38
      %s39 = sphi 0, %s36
      %s40 = sphi 0, %s39
      %s56 = sphi 0, %s40
      %s62 = sphi 0, %s64
      %s65 = sphi 0, %s62
      %s66 = sphi 0, %s65
      %s82 = sphi 0, %s66
      %s88 = sphi 0, %s90
      %s91 = sphi 0, %s88
      %s92 = sphi 0, %s91
      %s108 = sphi 0, %s92
      %s114 = sphi 0, %s116
      %s117 = sphi 0, %s114
      %s118 = sphi 0, %s117
      %s134 = sphi 0, %s118
    $region4: #{tpu_custom_call.1} parent=1 // loop_header_branch
      %17 = sbr.rel (%p15) target = $region8
    $region5: #{tpu_custom_call.1} parent=1 // loop_body
      %s19 = ssub.s32 %s14, 1
      %s20 = ssub.s32 %s14, 2
      %s27 = sadd.s32 1, %s22
      %p28 = scmp.ge.s32.totalorder %s27, 4
      %s29 = scalar_select %p28, 0, %s27
      %s30 = sadd.s32 1, %s21
      %s31 = scalar_select %p28, %s30, %s21
      %p32 = scmp.ge.s32.totalorder %s31, 1
      %s33 = scalar_select %p32, 0, %s31
      %s34 = ssub.s32 %s21, %s33
      %p35 = scmp.eq.s32.totalorder %s34, 0
      %s37 = sadd.s32 %s36, 1
      %s38 = scalar_select %p35, %s36, %s37
      %p41 = pneg %p35
      %p42 = scmp.eq.s32.totalorder %s14, 3
      %p43 = por %p41, %p42
      %p44 = scmp.ne.s32.totalorder %s36, %s39
      %p45 = scmp.eq.s32.totalorder %s14, 0
      %p46 = por %p44, %p45
      %p47 = scmp.ne.s32.totalorder %s36, %s39
      %p48 = scmp.eq.s32.totalorder %s19, 3
      %p49 = por %p47, %p48
      %p50 = scmp.ne.s32.totalorder %s39, %s40
      %p51 = scmp.eq.s32.totalorder %s19, 0
      %p52 = por %p50, %p51
      %p53 = scmp.ne.s32.totalorder %s39, %s40
      %p54 = scmp.eq.s32.totalorder %s20, 3
      %p55 = por %p53, %p54
      %p57 = scmp.ne.s32.totalorder %s40, %s56
      %p58 = scmp.eq.s32.totalorder %s20, 0
      %p59 = por %p57, %p58
      %s60 = ssub.s32 %s22, %s29
      %p61 = scmp.eq.s32.totalorder %s60, 0
      %s63 = sadd.s32 %s62, 1
      %s64 = scalar_select %p61, %s62, %s63
      %p67 = pneg %p61
      %p68 = scmp.eq.s32.totalorder %s14, 3
      %p69 = por %p67, %p68
      %p70 = scmp.ne.s32.totalorder %s62, %s65
      %p71 = scmp.eq.s32.totalorder %s14, 0
      %p72 = por %p70, %p71
      %p73 = scmp.ne.s32.totalorder %s62, %s65
      %p74 = scmp.eq.s32.totalorder %s19, 3
      %p75 = por %p73, %p74
      %p76 = scmp.ne.s32.totalorder %s65, %s66
      %p77 = scmp.eq.s32.totalorder %s19, 0
      %p78 = por %p76, %p77
      %p79 = scmp.ne.s32.totalorder %s65, %s66
      %p80 = scmp.eq.s32.totalorder %s20, 3
      %p81 = por %p79, %p80
      %p83 = scmp.ne.s32.totalorder %s66, %s82
      %p84 = scmp.eq.s32.totalorder %s20, 0
      %p85 = por %p83, %p84
      %s86 = ssub.s32 %s22, %s29
      %p87 = scmp.eq.s32.totalorder %s86, 0
      %s89 = sadd.s32 %s88, 1
      %s90 = scalar_select %p87, %s88, %s89
      %p93 = pneg %p87
      %p94 = scmp.eq.s32.totalorder %s14, 3
      %p95 = por %p93, %p94
      %p96 = scmp.ne.s32.totalorder %s88, %s91
      %p97 = scmp.eq.s32.totalorder %s14, 0
      %p98 = por %p96, %p97
      %p99 = scmp.ne.s32.totalorder %s88, %s91
      %p100 = scmp.eq.s32.totalorder %s19, 3
      %p101 = por %p99, %p100
      %p102 = scmp.ne.s32.totalorder %s91, %s92
      %p103 = scmp.eq.s32.totalorder %s19, 0
      %p104 = por %p102, %p103
      %p105 = scmp.ne.s32.totalorder %s91, %s92
      %p106 = scmp.eq.s32.totalorder %s20, 3
      %p107 = por %p105, %p106
      %p109 = scmp.ne.s32.totalorder %s92, %s108
      %p110 = scmp.eq.s32.totalorder %s20, 0
      %p111 = por %p109, %p110
      %s112 = ssub.s32 %s21, %s33
      %p113 = scmp.eq.s32.totalorder %s112, 0
      %s115 = sadd.s32 %s114, 1
      %s116 = scalar_select %p113, %s114, %s115
      %p119 = pneg %p113
      %p120 = scmp.eq.s32.totalorder %s14, 3
      %p121 = por %p119, %p120
      %p122 = scmp.ne.s32.totalorder %s114, %s117
      %p123 = scmp.eq.s32.totalorder %s14, 0
      %p124 = por %p122, %p123
      %p125 = scmp.ne.s32.totalorder %s114, %s117
      %p126 = scmp.eq.s32.totalorder %s19, 3
      %p127 = por %p125, %p126
      %p128 = scmp.ne.s32.totalorder %s117, %s118
      %p129 = scmp.eq.s32.totalorder %s19, 0
      %p130 = por %p128, %p129
      %p131 = scmp.ne.s32.totalorder %s117, %s118
      %p132 = scmp.eq.s32.totalorder %s20, 3
      %p133 = por %p131, %p132
      %p135 = scmp.ne.s32.totalorder %s118, %s134
      %p136 = scmp.eq.s32.totalorder %s20, 0
      %p137 = por %p135, %p136
      %p138 = scmp.le.s32.totalorder 1, %s14
      %p139 = scmp.lt.s32.totalorder %s14, 5
      %p140 = pnand %p138, %p139
      %p141 = pneg %p140
      // Predicated region
      $region9: #{tpu_custom_call.1} parent=5 // pred_check
        _
      $region10: #{tpu_custom_call.1} parent=5 // pred_check_branch
        %143 = sbr.rel (%p140) target = $region12
      $region11: #{tpu_custom_call.1} parent=5 // pred_region
        %s144 = ssub.s32 %s14, 1
        // Predicated region
        $region13: #{tpu_custom_call.1} parent=11 // pred_check
          %p145 = pneg %p52
        $region14: #{tpu_custom_call.1} parent=11 // pred_check_branch
          %147 = sbr.rel (%p145) target = $region16
        $region15: #{tpu_custom_call.1} parent=11 // pred_region
          %s149 = ssub.s32 128, 128
          %150 = vsyncadd [#allocation4], %s149
          %s151 = smul.addr %s23, 128
          %s152 = scalar_lea.hbm %s0, %s151
          %s154 = sshll.u32 [#allocation3], 4
          %s155 = int_to_ptr.vmem [resolvable:$true] %s154
          %157 = dma.hbm_to_vmem [thread:$0]  %s152, 128, %s155, [#allocation4]
        $region16: #{tpu_custom_call.1} parent=11 // pred_fallthru
          _
      $region12: #{tpu_custom_call.1} parent=5 // pred_fallthru
        _
      %p158 = scmp.lt.s32.totalorder %s14, 4
      // Predicated region
      $region17: #{tpu_custom_call.1} parent=5 // pred_check
        %p159 = pneg %p158
      $region18: #{tpu_custom_call.1} parent=5 // pred_check_branch
        %161 = sbr.rel (%p159) target = $region20
      $region19: #{tpu_custom_call.1} parent=5 // pred_region
        // Predicated region
        $region21: #{tpu_custom_call.1} parent=19 // pred_check
          %p162 = pneg %p72
        $region22: #{tpu_custom_call.1} parent=19 // pred_check_branch
          %164 = sbr.rel (%p162) target = $region24
        $region23: #{tpu_custom_call.1} parent=19 // pred_region
          %s165 = sand.u32 %s14, 1
          %s166 = scalar_lea.sflag [#allocation7], %s165
          %s167 = sand.u32 %s62, 1
          %s168 = smul.addr %s167, 128
          %s169 = scalar_lea.vmem [#allocation6], %s168
          %s171 = ssub.s32 2048, 2048
          %172 = vsyncadd %s166, %s171
          %s173 = smul.addr %s22, 16
          %s174 = smul.addr %s173, 128
          %s175 = scalar_lea.hbm %s1, %s174
          %s176 = sshll.u32 %s169, 4
          %s177 = int_to_ptr.vmem [resolvable:$true] %s176
          %182 = dma.hbm_to_vmem [thread:$0]  %s175, 2048, %s177, %s166, 128, 128, 8
        $region24: #{tpu_custom_call.1} parent=19 // pred_fallthru
          _
        // Predicated region
        $region25: #{tpu_custom_call.1} parent=19 // pred_check
          %p183 = pneg %p98
        $region26: #{tpu_custom_call.1} parent=19 // pred_check_branch
          %185 = sbr.rel (%p183) target = $region28
        $region27: #{tpu_custom_call.1} parent=19 // pred_region
          %s186 = sand.u32 %s14, 1
          %s187 = scalar_lea.sflag [#allocation7], %s186
          %s188 = sand.u32 %s88, 1
          %s189 = scalar_lea.vmem [#allocation8], %s188
          %s191 = ssub.s32 16, 16
          %192 = vsyncadd %s187, %s191
          %s193 = smul.addr %s22, 16
          %s194 = scalar_lea.hbm %s2, %s193
          %s196 = sshll.u32 %s189, 4
          %s197 = int_to_ptr.vmem [resolvable:$true] %s196
          %199 = dma.hbm_to_vmem [thread:$0]  %s194, 16, %s197, %s187
        $region28: #{tpu_custom_call.1} parent=19 // pred_fallthru
          _
      $region20: #{tpu_custom_call.1} parent=5 // pred_fallthru
        _
      %p200 = scmp.le.s32.totalorder 1, %s14
      %p201 = scmp.lt.s32.totalorder %s14, 5
      %p202 = pnand %p200, %p201
      %p203 = pneg %p202
      // Predicated region
      $region29: #{tpu_custom_call.1} parent=5 // pred_check
        _
      $region30: #{tpu_custom_call.1} parent=5 // pred_check_branch
        %205 = sbr.rel (%p202) target = $region32
      $region31: #{tpu_custom_call.1} parent=5 // pred_region
        %s206 = ssub.s32 %s14, 1
        // Predicated region
        $region33: #{tpu_custom_call.1} parent=31 // pred_check
          %p207 = pneg %p52
        $region34: #{tpu_custom_call.1} parent=31 // pred_check_branch
          %209 = sbr.rel (%p207) target = $region36
        $region35: #{tpu_custom_call.1} parent=31 // pred_region
          %210 = dma.done [#allocation4], 128
        $region36: #{tpu_custom_call.1} parent=31 // pred_fallthru
          _
        %s211 = sand.u32 %s19, 1
        %s212 = scalar_lea.sflag [#allocation7], %s211
        %s213 = sand.u32 %s65, 1
        %s214 = smul.addr %s213, 128
        %s215 = scalar_lea.vmem [#allocation6], %s214
        // Predicated region
        $region37: #{tpu_custom_call.1} parent=31 // pred_check
          %p216 = pneg %p78
        $region38: #{tpu_custom_call.1} parent=31 // pred_check_branch
          %218 = sbr.rel (%p216) target = $region40
        $region39: #{tpu_custom_call.1} parent=31 // pred_region
          %219 = dma.done %s212, 2048
        $region40: #{tpu_custom_call.1} parent=31 // pred_fallthru
          _
        %s220 = sand.u32 %s19, 1
        %s221 = scalar_lea.sflag [#allocation7], %s220
        %s222 = sand.u32 %s91, 1
        %s223 = scalar_lea.vmem [#allocation8], %s222
        // Predicated region
        $region41: #{tpu_custom_call.1} parent=31 // pred_check
          %p224 = pneg %p104
        $region42: #{tpu_custom_call.1} parent=31 // pred_check_branch
          %226 = sbr.rel (%p224) target = $region44
        $region43: #{tpu_custom_call.1} parent=31 // pred_region
          %227 = dma.done %s221, 16
        $region44: #{tpu_custom_call.1} parent=31 // pred_fallthru
          _
        %p228 = pneg %p52
        %p229 = pneg %p49
        %s230 = sand.u32 %s19, 1
        %s231 = scalar_lea.sflag [#allocation7], %s230
        %s232 = sand.u32 %s65, 1
        %s233 = smul.addr %s232, 128
        %s234 = scalar_lea.vmem [#allocation6], %s233
        %p235 = pneg %p78
        %p236 = pneg %p75
        %s237 = sand.u32 %s19, 1
        %s238 = scalar_lea.sflag [#allocation7], %s237
        %s239 = sand.u32 %s91, 1
        %s240 = scalar_lea.vmem [#allocation8], %s239
        %p241 = pneg %p104
        %p242 = pneg %p101
        %p243 = pneg %p130
        %p244 = pneg %p127
        %p245 = scmp.eq.s32.totalorder %s24, 0
        // Predicated region
        $region45: #{tpu_custom_call.1} parent=31 // pred_check
          %p246 = pneg %p245
        $region46: #{tpu_custom_call.1} parent=31 // pred_check_branch
          %248 = sbr.rel (%p246) target = $region48
        $region47: #{tpu_custom_call.1} parent=31 // pred_region
          %v249 = vld [vmem:[#allocation3] sm:$0xff]
          %v250 = vmul.f32 %v249, %v249
          %251 = vadd.xlane.f32.xlu0 %v250
          %v252 = vpop.xlane.xlu0 %251
          %v253 = vmax.f32 %v252, 1e-24
          %v254 = vrsqrt.pop %v253
          %v255 = vmul.f32 %v249, %v254
          %256 = vst [vmem:[#allocation2] sm:$0xff] %v255
        $region48: #{tpu_custom_call.1} parent=31 // pred_fallthru
          _
        %v257 = vld [vmem:[#allocation2] sm:$0xff]
        %v258 = vld [vmem:[%s215] sm:$0xff]
        %v259 = vld [vmem:[%s215 + $0x8] sm:$0xff]
        %v260 = vld [vmem:[%s215 + $0x10] sm:$0xff]
        %v261 = vld [vmem:[%s215 + $0x18] sm:$0xff]
        %v262 = vld [vmem:[%s215 + $0x20] sm:$0xff]
        %v263 = vld [vmem:[%s215 + $0x28] sm:$0xff]
        %v264 = vld [vmem:[%s215 + $0x30] sm:$0xff]
        %v265 = vld [vmem:[%s215 + $0x38] sm:$0xff]
        %v266 = vld [vmem:[%s215 + $0x40] sm:$0xff]
        %v267 = vld [vmem:[%s215 + $0x48] sm:$0xff]
        %v268 = vld [vmem:[%s215 + $0x50] sm:$0xff]
        %v269 = vld [vmem:[%s215 + $0x58] sm:$0xff]
        %v270 = vld [vmem:[%s215 + $0x60] sm:$0xff]
        %v271 = vld [vmem:[%s215 + $0x68] sm:$0xff]
        %v272 = vld [vmem:[%s215 + $0x70] sm:$0xff]
        %v273 = vld [vmem:[%s215 + $0x78] sm:$0xff]
        %v274 = vld [vmem:[%s223] sm:$0x1]
        %v276 = vlaneseq
        %v277 = vshrl.u32 %v276, 7
        %v278 = vsub.s32 0, %v277
        %v279 = vrot.slane %v274, %v278
        %281 = vmatprep.subr.mxu0 0.0
        %282 = vmatpush1.msra.mxu0 %v258
        %283 = vmatprep.subr.mxu0 0.0
        %284 = vmatpush1.msra.mxu0 %v259
        %285 = vmatprep.subr.mxu0 0.0
        %286 = vmatpush1.msra.mxu0 %v260
        %287 = vmatprep.subr.mxu0 0.0
        %288 = vmatpush1.msra.mxu0 %v261
        %289 = vmatprep.subr.mxu0 0.0
        %290 = vmatpush1.msra.mxu0 %v262
        %291 = vmatprep.subr.mxu0 0.0
        %292 = vmatpush1.msra.mxu0 %v263
        %293 = vmatprep.subr.mxu0 0.0
        %294 = vmatpush1.msra.mxu0 %v264
        %295 = vmatprep.subr.mxu0 0.0
        %296 = vmatpush1.msra.mxu0 %v265
        %297 = vmatprep.subr.mxu0 0.0
        %298 = vmatpush1.msra.mxu0 %v266
        %299 = vmatprep.subr.mxu0 0.0
        %300 = vmatpush1.msra.mxu0 %v267
        %301 = vmatprep.subr.mxu0 0.0
        %302 = vmatpush1.msra.mxu0 %v268
        %303 = vmatprep.subr.mxu0 0.0
        %304 = vmatpush1.msra.mxu0 %v269
        %305 = vmatprep.subr.mxu0 0.0
        %306 = vmatpush1.msra.mxu0 %v270
        %307 = vmatprep.subr.mxu0 0.0
        %308 = vmatpush1.msra.mxu0 %v271
        %309 = vmatprep.subr.mxu0 0.0
        %310 = vmatpush1.msra.mxu0 %v272
        %311 = vmatprep.subr.mxu0 0.0
        %312 = vmatpush1.msra.mxu0 %v273
        %313 = vmatprep.subr.mxu0 0.0
        %314 = vmatpush1.msra.mxu0 0.0
        %315 = vmatprep.subr.mxu0 0.0
        %316 = vmatpush1.msra.mxu0 0.0
        %317 = vmatprep.subr.mxu0 0.0
        %318 = vmatpush1.msra.mxu0 0.0
        %319 = vmatprep.subr.mxu0 0.0
        %320 = vmatpush1.msra.mxu0 0.0
        %321 = vmatprep.subr.mxu0 0.0
        %322 = vmatpush1.msra.mxu0 0.0
        %323 = vmatprep.subr.mxu0 0.0
        %324 = vmatpush1.msra.mxu0 0.0
        %325 = vmatprep.subr.mxu0 0.0
        %326 = vmatpush1.msra.mxu0 0.0
        %327 = vmatprep.subr.mxu0 0.0
        %328 = vmatpush1.msra.mxu0 0.0
        %329 = vmatprep.subr.mxu0 0.0
        %330 = vmatpush1.msra.mxu0 0.0
        %331 = vmatprep.subr.mxu0 0.0
        %332 = vmatpush1.msra.mxu0 0.0
        %333 = vmatprep.subr.mxu0 0.0
        %334 = vmatpush1.msra.mxu0 0.0
        %335 = vmatprep.subr.mxu0 0.0
        %336 = vmatpush1.msra.mxu0 0.0
        %337 = vmatprep.subr.mxu0 0.0
        %338 = vmatpush1.msra.mxu0 0.0
        %339 = vmatprep.subr.mxu0 0.0
        %340 = vmatpush1.msra.mxu0 0.0
        %341 = vmatprep.subr.mxu0 0.0
        %342 = vmatpush1.msra.mxu0 0.0
        %343 = vmatprep.subr.mxu0 0.0
        %344 = vmatpush1.msra.mxu0 0.0
        %345 = vmatprep.mubr.f32.mxu0 0.0
        %346 = vmatmul.mubr.f32.gmra.mrb[0].mxu0 %v257
        %v347 = vpop.f32.mrb[0].mxu0
        %v348 = vadd.f32 %v279, %v347
        %v349 = vpop.f32.mrb[0].mxu0
        %350 = vdwg.mxu0
        %vm351 = vcmp.gt.f32.partialorder %v348, 0.0
        %v352 = vmul.f32 %v348, 0.2
        %v353 = vsel %vm351, %v348, %v352
        %354 = vst [vmem:[#allocation2] sm:$0xff] %v353
        %p355 = scmp.eq.s32.totalorder %s24, 3
        // Predicated region
        $region49: #{tpu_custom_call.1} parent=31 // pred_check
          %p356 = pneg %p355
        $region50: #{tpu_custom_call.1} parent=31 // pred_check_branch
          %358 = sbr.rel (%p356) target = $region52
        $region51: #{tpu_custom_call.1} parent=31 // pred_region
          %359 = vst [vmem:[#allocation9] sm:$0xff] %v353
        $region52: #{tpu_custom_call.1} parent=31 // pred_fallthru
          _
        // Predicated region
        $region53: #{tpu_custom_call.1} parent=31 // pred_check
          %p360 = pneg %p127
        $region54: #{tpu_custom_call.1} parent=31 // pred_check_branch
          %362 = sbr.rel (%p360) target = $region56
        $region55: #{tpu_custom_call.1} parent=31 // pred_region
          %s364 = ssub.s32 128, 128
          %365 = vsyncadd [#allocation5], %s364
          %s366 = smul.addr %s23, 128
          %s367 = scalar_lea.hbm %s3, %s366
          %s369 = sshll.u32 [#allocation9], 4
          %s370 = int_to_ptr.vmem [resolvable:$true] %s369
          %372 = dma.vmem_to_hbm [thread:$0]  %s370, 128, %s367, [#allocation5]
        $region56: #{tpu_custom_call.1} parent=31 // pred_fallthru
          _
        // Predicated region
        $region57: #{tpu_custom_call.1} parent=31 // pred_check
          %p373 = pneg %p127
        $region58: #{tpu_custom_call.1} parent=31 // pred_check_branch
          %375 = sbr.rel (%p373) target = $region60
        $region59: #{tpu_custom_call.1} parent=31 // pred_region
          %376 = dma.done [#allocation5], 128
        $region60: #{tpu_custom_call.1} parent=31 // pred_fallthru
          _
      $region32: #{tpu_custom_call.1} parent=5 // pred_fallthru
        _
      %p377 = scmp.le.s32.totalorder 2, %s14
      // Predicated region
      $region61: #{tpu_custom_call.1} parent=5 // pred_check
        %p378 = pneg %p377
      $region62: #{tpu_custom_call.1} parent=5 // pred_check_branch
        %380 = sbr.rel (%p378) target = $region64
      $region63: #{tpu_custom_call.1} parent=5 // pred_region
        %s381 = ssub.s32 %s14, 2
      $region64: #{tpu_custom_call.1} parent=5 // pred_fallthru
        _
    $region6: #{tpu_custom_call.1} parent=1 // loop_footer
      %s18 = sadd.s32 1, %s14
    $region7: #{tpu_custom_call.1} parent=1 // loop_footer_branch
      %13 = sbr.rel target = $region3
    $region8: #{tpu_custom_call.1} parent=1 // loop_exit
      _
    %382 = vsyncpa [#allocation4], 1
    %s383 = scalar_lea.sflag [#allocation4], 1
    %384 = vsyncpa %s383, 1
    %385 = vsyncpa [#allocation7], 1
    %s386 = scalar_lea.sflag [#allocation7], 1
    %387 = vsyncpa %s386, 1
    %388 = vsyncpa [#allocation5], 1
    %s389 = scalar_lea.sflag [#allocation5], 1
    %390 = vsyncpa %s389, 1

</llo_original>
